<compile_context>
chip_gen: v5e
topology: v5e:2x2
jax: 0.10.0
libtpu: 0.0.40
codegen_flags: <defaults>
</compile_context>

<pallas_src>
import functools

import jax
import jax.numpy as jnp
from jax.experimental import pallas as pl
from jax.experimental.pallas import tpu as pltpu

LN_EPS = 1e-5  # torch.nn.LayerNorm default


def _round_up(n, m):
    return ((n + m - 1) // m) * m


def _layernorm_1pass(h, gamma, beta):
    """One-pass LayerNorm (var = E[h^2] - mu^2), guarded against cancellation."""
    mu = jnp.mean(h, axis=-1, keepdims=True)
    ms = jnp.mean(h * h, axis=-1, keepdims=True)
    var = jnp.maximum(ms - mu * mu, 0.0)
    return (h - mu) * jax.lax.rsqrt(var + LN_EPS) * gamma + beta


def actor_kernel(x_ref,
                 w1_ref, p1_ref,
                 w2_ref, p2_ref,
                 wp_ref, bp_ref,
                 out_ref):
    # p*_ref rows: 0 = bias, 1 = gamma, 2 = beta (rows 3..7 are padding).
    x = x_ref[...]

    # fc1 -> LayerNorm -> ReLU   (bf16 MXU operands, f32 accum + elementwise)
    h = jnp.dot(x.astype(jnp.bfloat16), w1_ref[...],
                preferred_element_type=jnp.float32) + p1_ref[0:1, :]
    h = jnp.maximum(_layernorm_1pass(h, p1_ref[1:2, :], p1_ref[2:3, :]), 0.0)

    # fc2 -> LayerNorm -> ReLU
    h = jnp.dot(h.astype(jnp.bfloat16), w2_ref[...],
                preferred_element_type=jnp.float32) + p2_ref[0:1, :]
    h = jnp.maximum(_layernorm_1pass(h, p2_ref[1:2, :], p2_ref[2:3, :]), 0.0)

    # pi -> tanh  (output is lane-padded to A_pad, full-vreg store)
    o = jnp.dot(h.astype(jnp.bfloat16), wp_ref[...],
                preferred_element_type=jnp.float32) + bp_ref[...]
    out_ref[...] = jnp.tanh(o).astype(out_ref.dtype)


@functools.partial(jax.jit, static_argnames=("num_actions", "tile_b"))
def actor_forward(x, params, num_actions, tile_b=1024):
    """x: (B, input_dims) f32. params: kernel-layout dict from init_params."""
    B, D = x.shape
    H1 = params["w1"].shape[1]
    H2 = params["w2"].shape[1]
    A_pad = params["wp"].shape[1]           # lane-padded action dim (mult of 128)

    # Batch tiling: sublane-aligned tile; keep >= 4 grid steps for v7x megacore
    # as long as that leaves healthy (>= 512-row) tiles.
    tile = min(_round_up(tile_b, 8), _round_up(B, 8))
    while tile >= 1024 and pl.cdiv(_round_up(B, 8), tile) < 4:
        tile //= 2
    b_pad = _round_up(B, tile)
    if b_pad != B:                           # only pad when actually needed
        x = jnp.pad(x, ((0, b_pad - B), (0, 0)))
    grid = (b_pad // tile,)

    def const(shape):
        # Full-array block, constant index_map -> DMA'd once, VMEM-resident.
        return pl.BlockSpec(shape, lambda i: (0, 0))

    in_specs = [
        pl.BlockSpec((tile, D), lambda i: (i, 0)),          # x tile
        const((D, H1)), const((8, H1)),                     # w1, packed ln1
        const((H1, H2)), const((8, H2)),                    # w2, packed ln2
        const((H2, A_pad)), const((1, A_pad)),              # wp, bp
    ]
    out_specs = pl.BlockSpec((tile, A_pad), lambda i: (i, 0))

    # Advisory cost estimate for the XLA scheduler.
    flops = 2 * b_pad * (D * H1 + H1 * H2 + H2 * A_pad)
    transcendentals = b_pad * (A_pad + 2)                   # tanh + 2x rsqrt per row
    weight_bytes = (D * H1 + H1 * H2 + H2 * A_pad) * 2      # bf16 weights
    param_bytes = (8 * H1 + 8 * H2 + A_pad) * 4             # packed f32 params
    io_bytes = b_pad * (D + A_pad) * 4
    cost = pl.CostEstimate(flops=flops, transcendentals=transcendentals,
                           bytes_accessed=weight_bytes + param_bytes + io_bytes)

    # Explicit scoped-VMEM limit (defaults: 16 MiB v5e, 32 MiB v6e/v7x).
    tile_io_bytes = 2 * 2 * tile * (D + A_pad) * 4          # double-buffered x/out
    act_bytes = tile * (H1 + H2) * 4                        # f32 intermediates
    est = 2 * weight_bytes + param_bytes + tile_io_bytes + act_bytes
    vmem_limit = int(min(max(2 * est, 32 << 20), 64 << 20))

    out = pl.pallas_call(
        actor_kernel,
        out_shape=jax.ShapeDtypeStruct((b_pad, A_pad), jnp.float32),
        grid=grid,
        in_specs=in_specs,
        out_specs=out_specs,
        compiler_params=pltpu.CompilerParams(
            dimension_semantics=("parallel",),
            vmem_limit_bytes=vmem_limit),
        cost_estimate=cost,
    )(
        x,
        params["w1"], params["p1"],
        params["w2"], params["p2"],
        params["wp"], params["bp"],
    )
    return out[:B, :num_actions]


def fanin_init(key, shape, fanin=None):
    """Mirror of torch fanin_init: U(-1/sqrt(fanin), 1/sqrt(fanin))."""
    fanin = fanin or shape[0]
    v = 1.0 / jnp.sqrt(jnp.float32(fanin))
    return jax.random.uniform(key, shape, jnp.float32, -v, v)


def init_params(key, input_dims, num_actions, hidden1=256, hidden2=128,
                init_w=0.003):
    """Params stored directly in kernel layout:
       * weights (in, out) in bf16 (MXU operands),
       * per-layer (8, H) f32 pack: row 0 bias, row 1 gamma, row 2 beta,
       * pi weight/bias zero-padded to A_pad = round_up(num_actions, 128).
       (Lane-aligned hidden dims recommended: multiples of 128.)"""
    ks = jax.random.split(key, 6)
    a_pad = _round_up(num_actions, 128)

    # torch nn.Linear weight is (out, in); fanin_init uses size[0] = out.
    fc1_w = fanin_init(ks[0], (hidden1, input_dims))
    fc2_w = fanin_init(ks[1], (hidden2, hidden1))
    pi_w = jax.random.uniform(ks[2], (num_actions, hidden2), jnp.float32,
                              -init_w, init_w)
    fc1_b = fanin_init(ks[3], (hidden1,), fanin=input_dims)
    fc2_b = fanin_init(ks[4], (hidden2,), fanin=hidden1)
    pi_b = jax.random.uniform(ks[5], (num_actions,), jnp.float32,
                              -init_w, init_w)

    def pack_ln(bias, h):
        p = jnp.zeros((8, h), jnp.float32)
        p = p.at[0].set(bias)                      # bias
        p = p.at[1].set(jnp.ones((h,), jnp.float32))  # gamma
        return p                                   # row 2 (beta) stays zero

    wp = jnp.zeros((hidden2, a_pad), jnp.float32).at[:, :num_actions].set(pi_w.T)
    bp = jnp.zeros((1, a_pad), jnp.float32).at[0, :num_actions].set(pi_b)

    return {
        "w1": fc1_w.T.astype(jnp.bfloat16),
        "p1": pack_ln(fc1_b, hidden1),
        "w2": fc2_w.T.astype(jnp.bfloat16),
        "p2": pack_ln(fc2_b, hidden2),
        "wp": wp.astype(jnp.bfloat16),
        "bp": bp,
    }


def actor_reference(x, p, num_actions):
    """Pure-JAX reference of the torch forward pass (same param layout)."""
    def ln(h, g, b):
        mu = jnp.mean(h, -1, keepdims=True)
        var = jnp.mean((h - mu) ** 2, -1, keepdims=True)
        return (h - mu) / jnp.sqrt(var + LN_EPS) * g + b

    w1 = p["w1"].astype(jnp.float32)
    w2 = p["w2"].astype(jnp.float32)
    wp = p["wp"].astype(jnp.float32)
    b1, g1, be1 = p["p1"][0:1], p["p1"][1:2], p["p1"][2:3]
    b2, g2, be2 = p["p2"][0:1], p["p2"][1:2], p["p2"][2:3]

    h = jnp.maximum(ln(x @ w1 + b1, g1, be1), 0.0)
    h = jnp.maximum(ln(h @ w2 + b2, g2, be2), 0.0)
    return jnp.tanh(h @ wp + p["bp"])[:, :num_actions]


# TODO(synk): save_checkpoint / load_checkpoint (host file I/O) have no kernel
# equivalent and are intentionally omitted.

if __name__ == "__main__":
    # Small shapes consistent with the module: batch=8, input_dims=32,
    # hidden1=256, hidden2=128 (lane-aligned), num_actions=8.
    key = jax.random.PRNGKey(0)
    k_x, k_p = jax.random.split(key)

    B, D, H1, H2, A = 8, 32, 256, 128, 8
    x = jax.random.normal(k_x, (B, D), jnp.float32)
    params = init_params(k_p, input_dims=D, num_actions=A,
                         hidden1=H1, hidden2=H2)

    out = actor_forward(x, params, num_actions=A)
    out = jax.block_until_ready(out)

    ref = actor_reference(x, params, A)
    assert out.shape == (B, A)
    # bf16 MXU operands vs f32 reference -> relaxed tolerance.
    assert jnp.allclose(out, ref, atol=2e-2, rtol=2e-2), (
        "mismatch vs reference: max abs err "
        f"{float(jnp.max(jnp.abs(out - ref)))}")

    print("KERNEL_OK")
</pallas_src>

<mosaic_0001>
module attributes {stable_mosaic.version = 11 : i64} {
  func.func @actor_kernel(%arg0: i32, %arg1: memref<8x32xf32, #tpu.memory_space<vmem>>, %arg2: memref<32x256xbf16, #tpu.memory_space<vmem>>, %arg3: memref<8x256xf32, #tpu.memory_space<vmem>>, %arg4: memref<256x128xbf16, #tpu.memory_space<vmem>>, %arg5: memref<8x128xf32, #tpu.memory_space<vmem>>, %arg6: memref<128x128xbf16, #tpu.memory_space<vmem>>, %arg7: memref<1x128xf32, #tpu.memory_space<vmem>>, %arg8: memref<8x128xf32, #tpu.memory_space<vmem>>) attributes {dimension_semantics = [#tpu.dimension_semantics<parallel>], iteration_bounds = array<i64: 1>, scalar_prefetch = 0 : i64, scratch_operands = 0 : i64, tpu.core_type = #tpu.core_type<tc>, window_params = [{transform_indices = @transform_0, window_bounds = array<i64: 8, 32>}, {pipeline_mode = #tpu.pipeline_mode<synchronous>, transform_indices = @transform_1, window_bounds = array<i64: 32, 256>}, {pipeline_mode = #tpu.pipeline_mode<synchronous>, transform_indices = @transform_2, window_bounds = array<i64: 8, 256>}, {pipeline_mode = #tpu.pipeline_mode<synchronous>, transform_indices = @transform_3, window_bounds = array<i64: 256, 128>}, {pipeline_mode = #tpu.pipeline_mode<synchronous>, transform_indices = @transform_4, window_bounds = array<i64: 8, 128>}, {pipeline_mode = #tpu.pipeline_mode<synchronous>, transform_indices = @transform_5, window_bounds = array<i64: 128, 128>}, {pipeline_mode = #tpu.pipeline_mode<synchronous>, transform_indices = @transform_6, window_bounds = array<i64: 1, 128>}, {transform_indices = @transform_7, window_bounds = array<i64: 8, 128>}]} {
    %c0 = arith.constant 0 : index
    %c0_0 = arith.constant 0 : index
    %0 = vector.load %arg1[%c0, %c0_0] : memref<8x32xf32, #tpu.memory_space<vmem>>, vector<8x32xf32>
    %1 = arith.truncf %0 : vector<8x32xf32> to vector<8x32xbf16>
    %c0_1 = arith.constant 0 : index
    %c0_2 = arith.constant 0 : index
    %2 = vector.load %arg2[%c0_1, %c0_2] : memref<32x256xbf16, #tpu.memory_space<vmem>>, vector<32x256xbf16>
    %cst = arith.constant dense<0.000000e+00> : vector<8x256xf32>
    %3 = tpu.matmul %1, %2, %cst {dimension_numbers = #tpu.dot_dimension_numbers<[1], [0], [0], [1], [0, 0, 1, 1], [], []>} : vector<8x32xbf16>, vector<32x256xbf16>, vector<8x256xf32> -> vector<8x256xf32>
    %c0_3 = arith.constant 0 : index
    %c0_4 = arith.constant 0 : index
    %4 = vector.load %arg3[%c0_3, %c0_4] : memref<8x256xf32, #tpu.memory_space<vmem>>, vector<1x256xf32>
    %5 = vector.broadcast %4 : vector<1x256xf32> to vector<8x256xf32>
    %6 = arith.addf %3, %5 : vector<8x256xf32>
    %c1 = arith.constant 1 : index
    %c0_5 = arith.constant 0 : index
    %7 = vector.load %arg3[%c1, %c0_5] : memref<8x256xf32, #tpu.memory_space<vmem>>, vector<1x256xf32>
    %c2 = arith.constant 2 : index
    %c0_6 = arith.constant 0 : index
    %8 = vector.load %arg3[%c2, %c0_6] : memref<8x256xf32, #tpu.memory_space<vmem>>, vector<1x256xf32>
    %cst_7 = arith.constant dense<0.000000e+00> : vector<8xf32>
    %9 = vector.multi_reduction <add>, %6, %cst_7 [1] : vector<8x256xf32> to vector<8xf32>
    %10 = vector.shape_cast %9 : vector<8xf32> to vector<8x1xf32>
    %cst_8 = arith.constant 2.560000e+02 : f32
    %11 = vector.broadcast %cst_8 : f32 to vector<8x1xf32>
    %12 = arith.divf %10, %11 : vector<8x1xf32>
    %13 = arith.mulf %6, %6 : vector<8x256xf32>
    %cst_9 = arith.constant dense<0.000000e+00> : vector<8xf32>
    %14 = vector.multi_reduction <add>, %13, %cst_9 [1] : vector<8x256xf32> to vector<8xf32>
    %15 = vector.shape_cast %14 : vector<8xf32> to vector<8x1xf32>
    %cst_10 = arith.constant 2.560000e+02 : f32
    %16 = vector.broadcast %cst_10 : f32 to vector<8x1xf32>
    %17 = arith.divf %15, %16 : vector<8x1xf32>
    %18 = arith.mulf %12, %12 : vector<8x1xf32>
    %19 = arith.subf %17, %18 : vector<8x1xf32>
    %cst_11 = arith.constant 0.000000e+00 : f32
    %20 = vector.broadcast %cst_11 : f32 to vector<8x1xf32>
    %21 = arith.maximumf %19, %20 : vector<8x1xf32>
    %22 = vector.broadcast %12 : vector<8x1xf32> to vector<8x256xf32>
    %23 = arith.subf %6, %22 : vector<8x256xf32>
    %cst_12 = arith.constant 9.99999974E-6 : f32
    %24 = vector.broadcast %cst_12 : f32 to vector<8x1xf32>
    %25 = arith.addf %21, %24 : vector<8x1xf32>
    %26 = math.rsqrt %25 : vector<8x1xf32>
    %27 = vector.broadcast %26 : vector<8x1xf32> to vector<8x256xf32>
    %28 = arith.mulf %23, %27 : vector<8x256xf32>
    %29 = vector.broadcast %7 : vector<1x256xf32> to vector<8x256xf32>
    %30 = arith.mulf %28, %29 : vector<8x256xf32>
    %31 = vector.broadcast %8 : vector<1x256xf32> to vector<8x256xf32>
    %32 = arith.addf %30, %31 : vector<8x256xf32>
    %cst_13 = arith.constant 0.000000e+00 : f32
    %33 = vector.broadcast %cst_13 : f32 to vector<8x256xf32>
    %34 = arith.maximumf %32, %33 : vector<8x256xf32>
    %35 = arith.truncf %34 : vector<8x256xf32> to vector<8x256xbf16>
    %c0_14 = arith.constant 0 : index
    %c0_15 = arith.constant 0 : index
    %36 = vector.load %arg4[%c0_14, %c0_15] : memref<256x128xbf16, #tpu.memory_space<vmem>>, vector<256x128xbf16>
    %cst_16 = arith.constant dense<0.000000e+00> : vector<8x128xf32>
    %37 = tpu.matmul %35, %36, %cst_16 {dimension_numbers = #tpu.dot_dimension_numbers<[1], [0], [0], [1], [0, 0, 1, 1], [], []>} : vector<8x256xbf16>, vector<256x128xbf16>, vector<8x128xf32> -> vector<8x128xf32>
    %c0_17 = arith.constant 0 : index
    %c0_18 = arith.constant 0 : index
    %38 = vector.load %arg5[%c0_17, %c0_18] : memref<8x128xf32, #tpu.memory_space<vmem>>, vector<1x128xf32>
    %39 = vector.broadcast %38 : vector<1x128xf32> to vector<8x128xf32>
    %40 = arith.addf %37, %39 : vector<8x128xf32>
    %c1_19 = arith.constant 1 : index
    %c0_20 = arith.constant 0 : index
    %41 = vector.load %arg5[%c1_19, %c0_20] : memref<8x128xf32, #tpu.memory_space<vmem>>, vector<1x128xf32>
    %c2_21 = arith.constant 2 : index
    %c0_22 = arith.constant 0 : index
    %42 = vector.load %arg5[%c2_21, %c0_22] : memref<8x128xf32, #tpu.memory_space<vmem>>, vector<1x128xf32>
    %cst_23 = arith.constant dense<0.000000e+00> : vector<8xf32>
    %43 = vector.multi_reduction <add>, %40, %cst_23 [1] : vector<8x128xf32> to vector<8xf32>
    %44 = vector.shape_cast %43 : vector<8xf32> to vector<8x1xf32>
    %cst_24 = arith.constant 1.280000e+02 : f32
    %45 = vector.broadcast %cst_24 : f32 to vector<8x1xf32>
    %46 = arith.divf %44, %45 : vector<8x1xf32>
    %47 = arith.mulf %40, %40 : vector<8x128xf32>
    %cst_25 = arith.constant dense<0.000000e+00> : vector<8xf32>
    %48 = vector.multi_reduction <add>, %47, %cst_25 [1] : vector<8x128xf32> to vector<8xf32>
    %49 = vector.shape_cast %48 : vector<8xf32> to vector<8x1xf32>
    %cst_26 = arith.constant 1.280000e+02 : f32
    %50 = vector.broadcast %cst_26 : f32 to vector<8x1xf32>
    %51 = arith.divf %49, %50 : vector<8x1xf32>
    %52 = arith.mulf %46, %46 : vector<8x1xf32>
    %53 = arith.subf %51, %52 : vector<8x1xf32>
    %cst_27 = arith.constant 0.000000e+00 : f32
    %54 = vector.broadcast %cst_27 : f32 to vector<8x1xf32>
    %55 = arith.maximumf %53, %54 : vector<8x1xf32>
    %56 = vector.broadcast %46 : vector<8x1xf32> to vector<8x128xf32>
    %57 = arith.subf %40, %56 : vector<8x128xf32>
    %cst_28 = arith.constant 9.99999974E-6 : f32
    %58 = vector.broadcast %cst_28 : f32 to vector<8x1xf32>
    %59 = arith.addf %55, %58 : vector<8x1xf32>
    %60 = math.rsqrt %59 : vector<8x1xf32>
    %61 = vector.broadcast %60 : vector<8x1xf32> to vector<8x128xf32>
    %62 = arith.mulf %57, %61 : vector<8x128xf32>
    %63 = vector.broadcast %41 : vector<1x128xf32> to vector<8x128xf32>
    %64 = arith.mulf %62, %63 : vector<8x128xf32>
    %65 = vector.broadcast %42 : vector<1x128xf32> to vector<8x128xf32>
    %66 = arith.addf %64, %65 : vector<8x128xf32>
    %cst_29 = arith.constant 0.000000e+00 : f32
    %67 = vector.broadcast %cst_29 : f32 to vector<8x128xf32>
    %68 = arith.maximumf %66, %67 : vector<8x128xf32>
    %69 = arith.truncf %68 : vector<8x128xf32> to vector<8x128xbf16>
    %c0_30 = arith.constant 0 : index
    %c0_31 = arith.constant 0 : index
    %70 = vector.load %arg6[%c0_30, %c0_31] : memref<128x128xbf16, #tpu.memory_space<vmem>>, vector<128x128xbf16>
    %cst_32 = arith.constant dense<0.000000e+00> : vector<8x128xf32>
    %71 = tpu.matmul %69, %70, %cst_32 {dimension_numbers = #tpu.dot_dimension_numbers<[1], [0], [0], [1], [0, 0, 1, 1], [], []>} : vector<8x128xbf16>, vector<128x128xbf16>, vector<8x128xf32> -> vector<8x128xf32>
    %c0_33 = arith.constant 0 : index
    %c0_34 = arith.constant 0 : index
    %72 = vector.load %arg7[%c0_33, %c0_34] : memref<1x128xf32, #tpu.memory_space<vmem>>, vector<1x128xf32>
    %73 = vector.broadcast %72 : vector<1x128xf32> to vector<8x128xf32>
    %74 = arith.addf %71, %73 : vector<8x128xf32>
    %75 = math.tanh %74 : vector<8x128xf32>
    %c0_35 = arith.constant 0 : index
    %c0_36 = arith.constant 0 : index
    %76 = vector.load %arg8[%c0_35, %c0_36] : memref<8x128xf32, #tpu.memory_space<vmem>>, vector<8x128xf32>
    tpu.vector_store %arg8[%c0_35, %c0_36], %75 {strides = array<i32>} : memref<8x128xf32, #tpu.memory_space<vmem>>, vector<8x128xf32>,
    return
  }
  func.func @transform_0(%arg0: i32) -> (i32, i32) {
    %c0_i32 = arith.constant 0 : i32
    %c0_i32_0 = arith.constant 0 : i32
    return %arg0, %c0_i32 : i32, i32
  }
  func.func @transform_1(%arg0: i32) -> (i32, i32) {
    %c0_i32 = arith.constant 0 : i32
    %c0_i32_0 = arith.constant 0 : i32
    %c0_i32_1 = arith.constant 0 : i32
    return %c0_i32, %c0_i32_0 : i32, i32
  }
  func.func @transform_2(%arg0: i32) -> (i32, i32) {
    %c0_i32 = arith.constant 0 : i32
    %c0_i32_0 = arith.constant 0 : i32
    %c0_i32_1 = arith.constant 0 : i32
    return %c0_i32, %c0_i32_0 : i32, i32
  }
  func.func @transform_3(%arg0: i32) -> (i32, i32) {
    %c0_i32 = arith.constant 0 : i32
    %c0_i32_0 = arith.constant 0 : i32
    %c0_i32_1 = arith.constant 0 : i32
    return %c0_i32, %c0_i32_0 : i32, i32
  }
  func.func @transform_4(%arg0: i32) -> (i32, i32) {
    %c0_i32 = arith.constant 0 : i32
    %c0_i32_0 = arith.constant 0 : i32
    %c0_i32_1 = arith.constant 0 : i32
    return %c0_i32, %c0_i32_0 : i32, i32
  }
  func.func @transform_5(%arg0: i32) -> (i32, i32) {
    %c0_i32 = arith.constant 0 : i32
    %c0_i32_0 = arith.constant 0 : i32
    %c0_i32_1 = arith.constant 0 : i32
    return %c0_i32, %c0_i32_0 : i32, i32
  }
  func.func @transform_6(%arg0: i32) -> (i32, i32) {
    %c0_i32 = arith.constant 0 : i32
    %c0_i32_0 = arith.constant 0 : i32
    %c0_i32_1 = arith.constant 0 : i32
    return %c0_i32, %c0_i32_0 : i32, i32
  }
  func.func @transform_7(%arg0: i32) -> (i32, i32) {
    %c0_i32 = arith.constant 0 : i32
    %c0_i32_0 = arith.constant 0 : i32
    return %arg0, %c0_i32 : i32, i32
  }
}

</mosaic_0001>

<llo_original>
// kernel: actor_forward.1
$region0: #{actor_forward.1}
  #allocation0 [shape = 'u32[]', space=smem, size = 0x4, offset = 0x4, fixed_abs, tag = 'smem constant byte address 0x4 - core index']
  #allocation1 [shape = 'u32[72,128]{1,0:T(1,128)}', space=vmem, size = 0x9000, scoped, tag = 'internal scratch']
  %s0 = inlined_call_operand.hbm [shape: f32[8,32], index: 0, kind: input, shape index: {}]
  %s1 = inlined_call_operand.hbm [shape: bf16[32,256], index: 1, kind: input, shape index: {}]
  %s2 = inlined_call_operand.hbm [shape: f32[8,256], index: 2, kind: input, shape index: {}]
  %s3 = inlined_call_operand.hbm [shape: bf16[256,128], index: 3, kind: input, shape index: {}]
  %s4 = inlined_call_operand.hbm [shape: f32[8,128], index: 4, kind: input, shape index: {}]
  %s5 = inlined_call_operand.hbm [shape: bf16[128,128], index: 5, kind: input, shape index: {}]
  %s6 = inlined_call_operand.hbm [shape: f32[1,128], index: 6, kind: input, shape index: {}]
  %s7 = inlined_call_operand.hbm [shape: f32[8,128], index: 7, kind: output, shape index: {}]
  %s8 = sld [smem:[#allocation0]]
  $region66: #{actor_forward.1} parent=0
    _
  %s10 = ssub.s32 1, %s8
  %s11 = scalar_select 0, %s10, %s8
  $region1: #{actor_forward.1} parent=0
    #allocation2 [shape = 'u8[4096]{0}', space=vmem, size = 0x1000, scoped, tag = 'input window, operand 0, single buffered']
    #allocation3 [shape = 's32[1]{0}', space=sflag, size = 0x4, scoped, tag = 'scoped memory for actor_forward.1']
    #allocation4 [shape = 's32[1]{0}', space=sflag, size = 0x4, scoped, tag = 'scoped memory for actor_forward.1']
    #allocation5 [shape = 'u8[16384]{0}', space=vmem, size = 0x4000, scoped, tag = 'input window, operand 1, single buffered']
    #allocation6 [shape = 's32[1]{0}', space=sflag, size = 0x4, scoped, tag = 'scoped memory for actor_forward.1']
    #allocation7 [shape = 'u8[8192]{0}', space=vmem, size = 0x2000, scoped, tag = 'input window, operand 2, single buffered']
    #allocation8 [shape = 'u8[65536]{0}', space=vmem, size = 0x10000, scoped, tag = 'input window, operand 3, single buffered']
    #allocation9 [shape = 's32[1]{0}', space=sflag, size = 0x4, scoped, tag = 'scoped memory for actor_forward.1']
    #allocation10 [shape = 'u8[4096]{0}', space=vmem, size = 0x1000, scoped, tag = 'input window, operand 4, single buffered']
    #allocation11 [shape = 'u8[32768]{0}', space=vmem, size = 0x8000, scoped, tag = 'input window, operand 5, single buffered']
    #allocation12 [shape = 's32[1]{0}', space=sflag, size = 0x4, scoped, tag = 'scoped memory for actor_forward.1']
    #allocation13 [shape = 'u8[512]{0}', space=vmem, size = 0x400, scoped, tag = 'input window, operand 6, single buffered']
    #allocation14 [shape = 'u8[4096]{0}', space=vmem, size = 0x1000, scoped, tag = 'output window, operand 0, single buffered']
    %12 = vsyncpa [#allocation3], 0
    %13 = vsyncpa [#allocation6], 0
    %14 = vsyncpa [#allocation9], 0
    %15 = vsyncpa [#allocation12], 0
    %16 = vsyncpa [#allocation4], 0
    // Predicated region
    $region2: #{actor_forward.1} parent=1 // pred_check
      _
    $region3: #{actor_forward.1} parent=1 // pred_check_branch
      %18 = sbr.rel (0) target = $region5
    $region4: #{actor_forward.1} parent=1 // pred_region
      %20 = vsyncadd [#allocation3], 0
      %s22 = sshll.u32 %s0, 4
      %s23 = int_to_ptr.hbm [resolvable:$true] %s22
      %s24 = sshll.u32 [#allocation2], 4
      %s25 = int_to_ptr.vmem [resolvable:$true] %s24
      %27 = dma.hbm_to_vmem [thread:$0]  %s23, 128, %s25, [#allocation3]
    $region5: #{actor_forward.1} parent=1 // pred_fallthru
      _
    // Predicated region
    $region6: #{actor_forward.1} parent=1 // pred_check
      _
    $region7: #{actor_forward.1} parent=1 // pred_check_branch
      %29 = sbr.rel (0) target = $region9
    $region8: #{actor_forward.1} parent=1 // pred_region
      %31 = vsyncadd [#allocation6], 0
      %s32 = sshll.u32 %s1, 4
      %s33 = int_to_ptr.hbm [resolvable:$true] %s32
      %s34 = sshll.u32 [#allocation5], 4
      %s35 = int_to_ptr.vmem [resolvable:$true] %s34
      %40 = dma.hbm_to_vmem [thread:$0]  %s33, 512, %s35, [#allocation6], 128, 128, 8
    $region9: #{actor_forward.1} parent=1 // pred_fallthru
      _
    // Predicated region
    $region10: #{actor_forward.1} parent=1 // pred_check
      _
    $region11: #{actor_forward.1} parent=1 // pred_check_branch
      %42 = sbr.rel (0) target = $region13
    $region12: #{actor_forward.1} parent=1 // pred_region
      %44 = vsyncadd [#allocation6], 0
      %s46 = sshll.u32 %s2, 4
      %s47 = int_to_ptr.hbm [resolvable:$true] %s46
      %s48 = sshll.u32 [#allocation7], 4
      %s49 = int_to_ptr.vmem [resolvable:$true] %s48
      %51 = dma.hbm_to_vmem [thread:$0]  %s47, 256, %s49, [#allocation6]
    $region13: #{actor_forward.1} parent=1 // pred_fallthru
      _
    // Predicated region
    $region14: #{actor_forward.1} parent=1 // pred_check
      _
    $region15: #{actor_forward.1} parent=1 // pred_check_branch
      %53 = sbr.rel (0) target = $region17
    $region16: #{actor_forward.1} parent=1 // pred_region
      %55 = vsyncadd [#allocation9], 0
      %s56 = sshll.u32 %s3, 4
      %s57 = int_to_ptr.hbm [resolvable:$true] %s56
      %s58 = sshll.u32 [#allocation8], 4
      %s59 = int_to_ptr.vmem [resolvable:$true] %s58
      %64 = dma.hbm_to_vmem [thread:$0]  %s57, 2048, %s59, [#allocation9], 64, 64, 4
    $region17: #{actor_forward.1} parent=1 // pred_fallthru
      _
    // Predicated region
    $region18: #{actor_forward.1} parent=1 // pred_check
      _
    $region19: #{actor_forward.1} parent=1 // pred_check_branch
      %66 = sbr.rel (0) target = $region21
    $region20: #{actor_forward.1} parent=1 // pred_region
      %68 = vsyncadd [#allocation9], 0
      %s70 = sshll.u32 %s4, 4
      %s71 = int_to_ptr.hbm [resolvable:$true] %s70
      %s72 = sshll.u32 [#allocation10], 4
      %s73 = int_to_ptr.vmem [resolvable:$true] %s72
      %75 = dma.hbm_to_vmem [thread:$0]  %s71, 128, %s73, [#allocation9]
    $region21: #{actor_forward.1} parent=1 // pred_fallthru
      _
    // Predicated region
    $region22: #{actor_forward.1} parent=1 // pred_check
      _
    $region23: #{actor_forward.1} parent=1 // pred_check_branch
      %77 = sbr.rel (0) target = $region25
    $region24: #{actor_forward.1} parent=1 // pred_region
      %79 = vsyncadd [#allocation12], 0
      %s80 = sshll.u32 %s5, 4
      %s81 = int_to_ptr.hbm [resolvable:$true] %s80
      %s82 = sshll.u32 [#allocation11], 4
      %s83 = int_to_ptr.vmem [resolvable:$true] %s82
      %88 = dma.hbm_to_vmem [thread:$0]  %s81, 1024, %s83, [#allocation12], 64, 64, 4
    $region25: #{actor_forward.1} parent=1 // pred_fallthru
      _
    // Predicated region
    $region26: #{actor_forward.1} parent=1 // pred_check
      _
    $region27: #{actor_forward.1} parent=1 // pred_check_branch
      %90 = sbr.rel (0) target = $region29
    $region28: #{actor_forward.1} parent=1 // pred_region
      %92 = vsyncadd [#allocation12], 0
      %s94 = sshll.u32 %s6, 4
      %s95 = int_to_ptr.hbm [resolvable:$true] %s94
      %s96 = sshll.u32 [#allocation13], 4
      %s97 = int_to_ptr.vmem [resolvable:$true] %s96
      %99 = dma.hbm_to_vmem [thread:$0]  %s95, 16, %s97, [#allocation12]
    $region29: #{actor_forward.1} parent=1 // pred_fallthru
      _
    // Predicated region
    $region30: #{actor_forward.1} parent=1 // pred_check
      _
    $region31: #{actor_forward.1} parent=1 // pred_check_branch
      %101 = sbr.rel (0) target = $region33
    $region32: #{actor_forward.1} parent=1 // pred_region
      %103 = dma.done [#allocation3], 128
    $region33: #{actor_forward.1} parent=1 // pred_fallthru
      _
    // Predicated region
    $region34: #{actor_forward.1} parent=1 // pred_check
      _
    $region35: #{actor_forward.1} parent=1 // pred_check_branch
      %105 = sbr.rel (0) target = $region37
    $region36: #{actor_forward.1} parent=1 // pred_region
      %107 = dma.done [#allocation6], 512
    $region37: #{actor_forward.1} parent=1 // pred_fallthru
      _
    // Predicated region
    $region38: #{actor_forward.1} parent=1 // pred_check
      _
    $region39: #{actor_forward.1} parent=1 // pred_check_branch
      %109 = sbr.rel (0) target = $region41
    $region40: #{actor_forward.1} parent=1 // pred_region
      %111 = dma.done [#allocation6], 256
    $region41: #{actor_forward.1} parent=1 // pred_fallthru
      _
    // Predicated region
    $region42: #{actor_forward.1} parent=1 // pred_check
      _
    $region43: #{actor_forward.1} parent=1 // pred_check_branch
      %113 = sbr.rel (0) target = $region45
    $region44: #{actor_forward.1} parent=1 // pred_region
      %115 = dma.done [#allocation9], 2048
    $region45: #{actor_forward.1} parent=1 // pred_fallthru
      _
    // Predicated region
    $region46: #{actor_forward.1} parent=1 // pred_check
      _
    $region47: #{actor_forward.1} parent=1 // pred_check_branch
      %117 = sbr.rel (0) target = $region49
    $region48: #{actor_forward.1} parent=1 // pred_region
      %119 = dma.done [#allocation9], 128
    $region49: #{actor_forward.1} parent=1 // pred_fallthru
      _
    // Predicated region
    $region50: #{actor_forward.1} parent=1 // pred_check
      _
    $region51: #{actor_forward.1} parent=1 // pred_check_branch
      %121 = sbr.rel (0) target = $region53
    $region52: #{actor_forward.1} parent=1 // pred_region
      %123 = dma.done [#allocation12], 1024
    $region53: #{actor_forward.1} parent=1 // pred_fallthru
      _
    // Predicated region
    $region54: #{actor_forward.1} parent=1 // pred_check
      _
    $region55: #{actor_forward.1} parent=1 // pred_check_branch
      %125 = sbr.rel (0) target = $region57
    $region56: #{actor_forward.1} parent=1 // pred_region
      %127 = dma.done [#allocation12], 16
    $region57: #{actor_forward.1} parent=1 // pred_fallthru
      _
    %v129 = vld [vmem:[#allocation2] sm:$0xff]
    %v130 = vpack.c.bf16 %v129, %v129
    %v131 = vld [vmem:[#allocation5] sm:$0xff]
    %v132 = vld [vmem:[#allocation5 + $0x8] sm:$0xff]
    %v133 = vld [vmem:[#allocation5 + $0x10] sm:$0xff]
    %v134 = vld [vmem:[#allocation5 + $0x18] sm:$0xff]
    %v135 = vld [vmem:[#allocation7] ss:$8 sm:$0x3]
    %v137 = vperm.slane %v135, 0
    %v138 = vperm.slane %v135, 1
    %v145 = vunpack.c.l.b16 %v131
    %v146 = vunpack.c.h.b16 %v131
    %v147 = vunpack.c.l.b16 %v132
    %v148 = vunpack.c.h.b16 %v132
    %v149 = vunpack.c.l.b16 %v133
    %v150 = vunpack.c.h.b16 %v133
    %v151 = vunpack.c.l.b16 %v134
    %v152 = vunpack.c.h.b16 %v134
    %v153 = vpack.c.b16 %v147, %v145
    %v154 = vpack.c.b16 %v148, %v146
    %v155 = vpack.c.b16 %v151, %v149
    %v156 = vpack.c.b16 %v152, %v150
    %vm161 = vcmask 261120
    %v163 = vsel %vm161, %v130, 0
    %165 = vmatpush.bf16.msra.mxu0 0
    %166 = vmatpush.bf16.msra.mxu0 0
    %167 = vmatpush.bf16.msra.mxu0 0
    %168 = vmatpush.bf16.msra.mxu0 0
    %169 = vmatpush.bf16.msra.mxu0 0
    %170 = vmatpush.bf16.msra.mxu0 0
    %171 = vmatpush.bf16.msra.mxu0 %v155
    %172 = vmatpush.bf16.msra.mxu0 %v153
    %173 = vmatmul.bf16.gmra.mxu0 %v163
    %v174 = vpop.f32.mrf.mxu0
    %v175 = vadd.f32 %v137, %v174
    %v176 = vpop.f32.mrf.mxu0
    %177 = vdwg.mxu0
    %178 = vmatpush.bf16.msra.mxu0 0
    %179 = vmatpush.bf16.msra.mxu0 0
    %180 = vmatpush.bf16.msra.mxu0 0
    %181 = vmatpush.bf16.msra.mxu0 0
    %182 = vmatpush.bf16.msra.mxu0 0
    %183 = vmatpush.bf16.msra.mxu0 0
    %184 = vmatpush.bf16.msra.mxu0 %v156
    %185 = vmatpush.bf16.msra.mxu0 %v154
    %186 = vmatmul.bf16.gmra.mxu0 %v163
    %v187 = vpop.f32.mrf.mxu0
    %v188 = vadd.f32 %v138, %v187
    %v189 = vpop.f32.mrf.mxu0
    %190 = vdwg.mxu0
    %s191 = scalar_lea.vmem [#allocation7], 1
    %v192 = vld [vmem:[%s191] ss:$8 sm:$0x3]
    %s193 = scalar_lea.vmem [#allocation7], 2
    %v194 = vld [vmem:[%s193] ss:$8 sm:$0x3]
    %v195 = vadd.f32 %v175, %v188
    %196 = vadd.xlane.f32.xlu0 %v195
    %v197 = vpop.xlane.xlu0 %196
    %v198 = vrcp.pop 256.0
    %v199 = vmul.f32 256.0, %v198
    %v200 = vsub.f32 1.0, %v199
    %v201 = vmul.f32 %v198, %v200
    %v202 = vadd.f32 %v198, %v201
    %vm203 = vweird.f32 %v198
    %v204 = vsel %vm203, %v198, %v202
    %v205 = vmul.f32 %v197, %v204
    %v206 = vmul.f32 %v175, %v175
    %v207 = vmul.f32 %v188, %v188
    %v208 = vadd.f32 %v206, %v207
    %209 = vadd.xlane.f32.xlu0 %v208
    %v210 = vpop.xlane.xlu0 %209
    %v211 = vmul.f32 %v210, %v204
    %v212 = vmul.f32 %v205, %v205
    %v213 = vsub.f32 %v211, %v212
    %v214 = vmax.f32 %v213, 0.0
    %v215 = vsub.f32 %v175, %v205
    %v216 = vsub.f32 %v188, %v205
    %v217 = vadd.f32 %v214, 1e-05
    %v218 = vrsqrt.pop %v217
    %v219 = vmul.f32 %v218, %v217
    %v220 = vmul.f32 %v219, %v218
    %v221 = vmul.f32 0.5, %v220
    %v222 = vsub.f32 1.5, %v221
    %v223 = vmul.f32 %v218, %v222
    %vm224 = vweird.f32 %v217
    %vm225 = vweird.f32 %v218
    %vm226 = vmor %vm224, %vm225
    %v227 = vsel %vm226, %v218, %v223
    %v228 = vmul.f32 %v215, %v227
    %v229 = vmul.f32 %v216, %v227
    %v231 = vperm.slane %v192, 0
    %v232 = vperm.slane %v192, 1
    %v235 = vmul.f32 %v228, %v231
    %v236 = vmul.f32 %v229, %v232
    %v238 = vperm.slane %v194, 0
    %v239 = vperm.slane %v194, 1
    %v242 = vadd.f32 %v235, %v238
    %v243 = vadd.f32 %v236, %v239
    %v244 = vmax.f32 %v242, 0.0
    %v245 = vmax.f32 %v243, 0.0
    %v246 = vpack.c.bf16 %v244, %v244
    %v247 = vpack.c.bf16 %v245, %v245
    %v248 = vld [vmem:[#allocation8] sm:$0xf]
    %v249 = vld [vmem:[#allocation8 + $0x4] sm:$0xf]
    %v250 = vld [vmem:[#allocation8 + $0x8] sm:$0xf]
    %v251 = vld [vmem:[#allocation8 + $0xc] sm:$0xf]
    %v252 = vld [vmem:[#allocation8 + $0x10] sm:$0xf]
    %v253 = vld [vmem:[#allocation8 + $0x14] sm:$0xf]
    %v254 = vld [vmem:[#allocation8 + $0x18] sm:$0xf]
    %v255 = vld [vmem:[#allocation8 + $0x1c] sm:$0xf]
    %v256 = vld [vmem:[#allocation8 + $0x20] sm:$0xf]
    %v257 = vld [vmem:[#allocation8 + $0x24] sm:$0xf]
    %v258 = vld [vmem:[#allocation8 + $0x28] sm:$0xf]
    %v259 = vld [vmem:[#allocation8 + $0x2c] sm:$0xf]
    %v260 = vld [vmem:[#allocation8 + $0x30] sm:$0xf]
    %v261 = vld [vmem:[#allocation8 + $0x34] sm:$0xf]
    %v262 = vld [vmem:[#allocation8 + $0x38] sm:$0xf]
    %v263 = vld [vmem:[#allocation8 + $0x3c] sm:$0xf]
    %v264 = vld [vmem:[#allocation8 + $0x40] sm:$0xf]
    %v265 = vld [vmem:[#allocation8 + $0x44] sm:$0xf]
    %v266 = vld [vmem:[#allocation8 + $0x48] sm:$0xf]
    %v267 = vld [vmem:[#allocation8 + $0x4c] sm:$0xf]
    %v268 = vld [vmem:[#allocation8 + $0x50] sm:$0xf]
    %v269 = vld [vmem:[#allocation8 + $0x54] sm:$0xf]
    %v270 = vld [vmem:[#allocation8 + $0x58] sm:$0xf]
    %v271 = vld [vmem:[#allocation8 + $0x5c] sm:$0xf]
    %v272 = vld [vmem:[#allocation8 + $0x60] sm:$0xf]
    %v273 = vld [vmem:[#allocation8 + $0x64] sm:$0xf]
    %v274 = vld [vmem:[#allocation8 + $0x68] sm:$0xf]
    %v275 = vld [vmem:[#allocation8 + $0x6c] sm:$0xf]
    %v276 = vld [vmem:[#allocation8 + $0x70] sm:$0xf]
    %v277 = vld [vmem:[#allocation8 + $0x74] sm:$0xf]
    %v278 = vld [vmem:[#allocation8 + $0x78] sm:$0xf]
    %v279 = vld [vmem:[#allocation8 + $0x7c] sm:$0xf]
    %v280 = vld [vmem:[#allocation10] sm:$0x1]
    %v281 = vperm.slane %v280, 0
    %v314 = vunpack.c.l.b16 %v248
    %v315 = vunpack.c.l.b16 %v249
    %v316 = vunpack.c.l.b16 %v250
    %v317 = vunpack.c.l.b16 %v251
    %v318 = vunpack.c.l.b16 %v252
    %v319 = vunpack.c.l.b16 %v253
    %v320 = vunpack.c.l.b16 %v254
    %v321 = vunpack.c.l.b16 %v255
    %v322 = vunpack.c.l.b16 %v256
    %v323 = vunpack.c.l.b16 %v257
    %v324 = vunpack.c.l.b16 %v258
    %v325 = vunpack.c.l.b16 %v259
    %v326 = vunpack.c.l.b16 %v260
    %v327 = vunpack.c.l.b16 %v261
    %v328 = vunpack.c.l.b16 %v262
    %v329 = vunpack.c.l.b16 %v263
    %v330 = vunpack.c.l.b16 %v264
    %v331 = vunpack.c.l.b16 %v265
    %v332 = vunpack.c.l.b16 %v266
    %v333 = vunpack.c.l.b16 %v267
    %v334 = vunpack.c.l.b16 %v268
    %v335 = vunpack.c.l.b16 %v269
    %v336 = vunpack.c.l.b16 %v270
    %v337 = vunpack.c.l.b16 %v271
    %v338 = vunpack.c.l.b16 %v272
    %v339 = vunpack.c.l.b16 %v273
    %v340 = vunpack.c.l.b16 %v274
    %v341 = vunpack.c.l.b16 %v275
    %v342 = vunpack.c.l.b16 %v276
    %v343 = vunpack.c.l.b16 %v277
    %v344 = vunpack.c.l.b16 %v278
    %v345 = vunpack.c.l.b16 %v279
    %v346 = vpack.c.b16 %v315, %v314
    %v347 = vpack.c.b16 %v317, %v316
    %v348 = vpack.c.b16 %v319, %v318
    %v349 = vpack.c.b16 %v321, %v320
    %v350 = vpack.c.b16 %v323, %v322
    %v351 = vpack.c.b16 %v325, %v324
    %v352 = vpack.c.b16 %v327, %v326
    %v353 = vpack.c.b16 %v329, %v328
    %v354 = vpack.c.b16 %v331, %v330
    %v355 = vpack.c.b16 %v333, %v332
    %v356 = vpack.c.b16 %v335, %v334
    %v357 = vpack.c.b16 %v337, %v336
    %v358 = vpack.c.b16 %v339, %v338
    %v359 = vpack.c.b16 %v341, %v340
    %v360 = vpack.c.b16 %v343, %v342
    %v361 = vpack.c.b16 %v345, %v344
    %378 = vmatpush.bf16.msra.mxu0 %v353
    %379 = vmatpush.bf16.msra.mxu0 %v352
    %380 = vmatpush.bf16.msra.mxu0 %v351
    %381 = vmatpush.bf16.msra.mxu0 %v350
    %382 = vmatpush.bf16.msra.mxu0 %v349
    %383 = vmatpush.bf16.msra.mxu0 %v348
    %384 = vmatpush.bf16.msra.mxu0 %v347
    %385 = vmatpush.bf16.msra.mxu0 %v346
    %386 = vmatmul.bf16.gmra.mxu0 %v246
    %v387 = vpop.f32.mrf.mxu0
    %v388 = vadd.f32 %v281, %v387
    %v389 = vpop.f32.mrf.mxu0
    %390 = vdwg.mxu0
    %391 = vmatpush.bf16.msra.mxu0 %v361
    %392 = vmatpush.bf16.msra.mxu0 %v360
    %393 = vmatpush.bf16.msra.mxu0 %v359
    %394 = vmatpush.bf16.msra.mxu0 %v358
    %395 = vmatpush.bf16.msra.mxu0 %v357
    %396 = vmatpush.bf16.msra.mxu0 %v356
    %397 = vmatpush.bf16.msra.mxu0 %v355
    %398 = vmatpush.bf16.msra.mxu0 %v354
    %399 = vmatmul.bf16.gmra.mxu0 %v247
    %v400 = vpop.f32.mrf.mxu0
    %v401 = vadd.f32 %v388, %v400
    %v402 = vpop.f32.mrf.mxu0
    %403 = vdwg.mxu0
    %v404 = vld [vmem:[#allocation10 + $0x1] sm:$0x1]
    %v405 = vld [vmem:[#allocation10 + $0x2] sm:$0x1]
    %406 = vadd.xlane.f32.xlu0 %v401
    %v407 = vpop.xlane.xlu0 %406
    %v408 = vrcp.pop 128.0
    %v409 = vmul.f32 128.0, %v408
    %v410 = vsub.f32 1.0, %v409
    %v411 = vmul.f32 %v408, %v410
    %v412 = vadd.f32 %v408, %v411
    %vm413 = vweird.f32 %v408
    %v414 = vsel %vm413, %v408, %v412
    %v415 = vmul.f32 %v407, %v414
    %v416 = vmul.f32 %v401, %v401
    %417 = vadd.xlane.f32.xlu0 %v416
    %v418 = vpop.xlane.xlu0 %417
    %v419 = vmul.f32 %v418, %v414
    %v420 = vmul.f32 %v415, %v415
    %v421 = vsub.f32 %v419, %v420
    %v422 = vmax.f32 %v421, 0.0
    %v423 = vsub.f32 %v401, %v415
    %v424 = vadd.f32 %v422, 1e-05
    %v425 = vrsqrt.pop %v424
    %v426 = vmul.f32 %v425, %v424
    %v427 = vmul.f32 %v426, %v425
    %v428 = vmul.f32 0.5, %v427
    %v429 = vsub.f32 1.5, %v428
    %v430 = vmul.f32 %v425, %v429
    %vm431 = vweird.f32 %v424
    %vm432 = vweird.f32 %v425
    %vm433 = vmor %vm431, %vm432
    %v434 = vsel %vm433, %v425, %v430
    %v435 = vmul.f32 %v423, %v434
    %v436 = vperm.slane %v404, 0
    %v437 = vmul.f32 %v435, %v436
    %v438 = vperm.slane %v405, 0
    %v439 = vadd.f32 %v437, %v438
    %v440 = vmax.f32 %v439, 0.0
    %v441 = vpack.c.bf16 %v440, %v440
    %v442 = vld [vmem:[#allocation11] sm:$0xf]
    %v443 = vld [vmem:[#allocation11 + $0x4] sm:$0xf]
    %v444 = vld [vmem:[#allocation11 + $0x8] sm:$0xf]
    %v445 = vld [vmem:[#allocation11 + $0xc] sm:$0xf]
    %v446 = vld [vmem:[#allocation11 + $0x10] sm:$0xf]
    %v447 = vld [vmem:[#allocation11 + $0x14] sm:$0xf]
    %v448 = vld [vmem:[#allocation11 + $0x18] sm:$0xf]
    %v449 = vld [vmem:[#allocation11 + $0x1c] sm:$0xf]
    %v450 = vld [vmem:[#allocation11 + $0x20] sm:$0xf]
    %v451 = vld [vmem:[#allocation11 + $0x24] sm:$0xf]
    %v452 = vld [vmem:[#allocation11 + $0x28] sm:$0xf]
    %v453 = vld [vmem:[#allocation11 + $0x2c] sm:$0xf]
    %v454 = vld [vmem:[#allocation11 + $0x30] sm:$0xf]
    %v455 = vld [vmem:[#allocation11 + $0x34] sm:$0xf]
    %v456 = vld [vmem:[#allocation11 + $0x38] sm:$0xf]
    %v457 = vld [vmem:[#allocation11 + $0x3c] sm:$0xf]
    %v458 = vld [vmem:[#allocation13] sm:$0x1]
    %v460 = vperm.slane %v458, 0
    %v478 = vunpack.c.l.b16 %v442
    %v479 = vunpack.c.l.b16 %v443
    %v480 = vunpack.c.l.b16 %v444
    %v481 = vunpack.c.l.b16 %v445
    %v482 = vunpack.c.l.b16 %v446
    %v483 = vunpack.c.l.b16 %v447
    %v484 = vunpack.c.l.b16 %v448
    %v485 = vunpack.c.l.b16 %v449
    %v486 = vunpack.c.l.b16 %v450
    %v487 = vunpack.c.l.b16 %v451
    %v488 = vunpack.c.l.b16 %v452
    %v489 = vunpack.c.l.b16 %v453
    %v490 = vunpack.c.l.b16 %v454
    %v491 = vunpack.c.l.b16 %v455
    %v492 = vunpack.c.l.b16 %v456
    %v493 = vunpack.c.l.b16 %v457
    %v494 = vpack.c.b16 %v479, %v478
    %v495 = vpack.c.b16 %v481, %v480
    %v496 = vpack.c.b16 %v483, %v482
    %v497 = vpack.c.b16 %v485, %v484
    %v498 = vpack.c.b16 %v487, %v486
    %v499 = vpack.c.b16 %v489, %v488
    %v500 = vpack.c.b16 %v491, %v490
    %v501 = vpack.c.b16 %v493, %v492
    %510 = vmatpush.bf16.msra.mxu0 %v501
    %511 = vmatpush.bf16.msra.mxu0 %v500
    %512 = vmatpush.bf16.msra.mxu0 %v499
    %513 = vmatpush.bf16.msra.mxu0 %v498
    %514 = vmatpush.bf16.msra.mxu0 %v497
    %515 = vmatpush.bf16.msra.mxu0 %v496
    %516 = vmatpush.bf16.msra.mxu0 %v495
    %517 = vmatpush.bf16.msra.mxu0 %v494
    %518 = vmatmul.bf16.gmra.mxu0 %v441
    %v519 = vpop.f32.mrf.mxu0
    %v520 = vadd.f32 %v460, %v519
    %v521 = vpop.f32.mrf.mxu0
    %522 = vdwg.mxu0
    %v523 = vtanh.pop %v520
    %524 = vst [vmem:[#allocation14] sm:$0xff] %v523
    // Predicated region
    $region58: #{actor_forward.1} parent=1 // pred_check
      _
    $region59: #{actor_forward.1} parent=1 // pred_check_branch
      %526 = sbr.rel (0) target = $region61
    $region60: #{actor_forward.1} parent=1 // pred_region
      %528 = vsyncadd [#allocation4], 0
      %s530 = sshll.u32 [#allocation14], 4
      %s531 = int_to_ptr.vmem [resolvable:$true] %s530
      %s532 = sshll.u32 %s7, 4
      %s533 = int_to_ptr.hbm [resolvable:$true] %s532
      %535 = dma.vmem_to_hbm [thread:$0]  %s531, 128, %s533, [#allocation4]
    $region61: #{actor_forward.1} parent=1 // pred_fallthru
      _
    // Predicated region
    $region62: #{actor_forward.1} parent=1 // pred_check
      _
    $region63: #{actor_forward.1} parent=1 // pred_check_branch
      %537 = sbr.rel (0) target = $region65
    $region64: #{actor_forward.1} parent=1 // pred_region
      %539 = dma.done [#allocation4], 128
    $region65: #{actor_forward.1} parent=1 // pred_fallthru
      _
    %540 = vsyncpa [#allocation3], 1
    %541 = vsyncpa [#allocation6], 1
    %542 = vsyncpa [#allocation9], 1
    %543 = vsyncpa [#allocation12], 1
    %544 = vsyncpa [#allocation4], 1

</llo_original>
